<compile_context>
chip_gen: v7x
topology: tpu7x:2x2x1
jax: 0.10.0
libtpu: 0.0.40
codegen_flags: <defaults>
</compile_context>

<pallas_src>
import jax
import jax.numpy as jnp
from jax import lax
from jax.experimental import pallas as pl
from jax.experimental.pallas import tpu as pltpu


def _round_up(a, b):
    return ((a + b - 1) // b) * b


def _sublane(dtype):
    itemsize = jnp.dtype(dtype).itemsize
    if itemsize >= 4:
        return 8
    if itemsize == 2:
        return 16
    return 32


def _choose_tile(dim, cap=1024):
    """Full dim if it fits the cap, else the largest 128-multiple divisor <= cap."""
    if dim <= cap:
        return dim
    for cand in (1024, 512, 256, 128):
        if cand <= cap and dim % cand == 0:
            return cand
    return dim  # odd large dim: fall back to full extent (correct, just VMEM-heavier)


def _spec(shape, index_map, resident):
    # Constant-index blocks don't need double buffering -> single VMEM buffer.
    if resident:
        return pl.BlockSpec(shape, index_map, pipeline_mode=pl.Buffered(1))
    return pl.BlockSpec(shape, index_map)


def _linear_kernel_fused(x_ref, w_ref, b_ref, o_ref):
    # Fast path: full K resident per tile.  x:(tm,K)  w:(tn,K)  b:(1,tn)  o:(tm,tn)
    acc = lax.dot_general(
        x_ref[...], w_ref[...],
        dimension_numbers=(((1,), (1,)), ((), ())),
        preferred_element_type=jnp.float32)
    o_ref[...] = (acc + b_ref[...].astype(jnp.float32)).astype(o_ref.dtype)


def _linear_kernel_acc(x_ref, w_ref, b_ref, o_ref, acc_ref):
    # General path with K-tiling.  acc_ref is f32 VMEM scratch, o_ref resident over K.
    k = pl.program_id(2)

    @pl.when(k == 0)
    def _():
        acc_ref[...] = jnp.zeros_like(acc_ref)

    acc_ref[...] += lax.dot_general(
        x_ref[...], w_ref[...],
        dimension_numbers=(((1,), (1,)), ((), ())),
        preferred_element_type=jnp.float32)

    @pl.when(k == pl.num_programs(2) - 1)
    def _():
        o_ref[...] = (acc_ref[...] + b_ref[...].astype(jnp.float32)).astype(o_ref.dtype)


def linear_projector(x, weight, bias, *, tm=512, max_tile=1024, interpret=False):
    """y = x @ weight.T + bias over the last axis of x.

    x:      (..., dim_in)
    weight: (dim_out, dim_in)  -- PyTorch nn.Linear layout
    bias:   (dim_out,)
    """
    orig_shape = x.shape
    n_out, k_in = weight.shape
    if orig_shape[-1] != k_in:
        raise ValueError(f"x last dim {orig_shape[-1]} != weight in_features {k_in}")

    x2 = x.reshape(-1, k_in)
    m = x2.shape[0]
    b2 = bias.reshape(1, n_out)

    # Row tile: large by default, clamped & aligned to sublane granularity for tiny inputs.
    sub = _sublane(x.dtype)
    tm_eff = min(tm, max(_round_up(m, sub), sub))
    tn = _choose_tile(n_out, max_tile)
    tk = _choose_tile(k_in, max_tile)

    gm = pl.cdiv(m, tm_eff)   # ragged tail rows handled by masked boundary block
    gn = pl.cdiv(n_out, tn)
    gk = pl.cdiv(k_in, tk)

    w_resident = (gn == 1 and gk == 1)   # weight block never changes -> single buffer
    b_resident = (gn == 1)               # bias block never changes

    if gk == 1:
        # ---- fast path: 2-D grid, fused bias, no scratch ----
        x_spec = pl.BlockSpec((tm_eff, tk), lambda i, j: (i, 0))
        w_spec = _spec((tn, tk), lambda i, j: (j, 0), w_resident)
        b_spec = _spec((1, tn), lambda i, j: (0, j), b_resident)
        o_spec = pl.BlockSpec((tm_eff, tn), lambda i, j: (i, j))
        out = pl.pallas_call(
            _linear_kernel_fused,
            out_shape=jax.ShapeDtypeStruct((m, n_out), x.dtype),
            grid_spec=pltpu.PrefetchScalarGridSpec(
                num_scalar_prefetch=0,
                grid=(gm, gn),
                in_specs=[x_spec, w_spec, b_spec],
                out_specs=o_spec,
            ),
            compiler_params=pltpu.CompilerParams(
                dimension_semantics=("parallel", "parallel"),
                vmem_limit_bytes=32 * 1024 * 1024,
            ),
            interpret=interpret,
        )(x2, weight, b2)
    else:
        # ---- general path: K-tiled with f32 accumulator ----
        x_spec = pl.BlockSpec((tm_eff, tk), lambda i, j, k: (i, k))
        w_spec = _spec((tn, tk), lambda i, j, k: (j, k), w_resident)
        b_spec = _spec((1, tn), lambda i, j, k: (0, j), b_resident)
        o_spec = pl.BlockSpec((tm_eff, tn), lambda i, j, k: (i, j))
        out = pl.pallas_call(
            _linear_kernel_acc,
            out_shape=jax.ShapeDtypeStruct((m, n_out), x.dtype),
            grid_spec=pltpu.PrefetchScalarGridSpec(
                num_scalar_prefetch=0,
                grid=(gm, gn, gk),
                in_specs=[x_spec, w_spec, b_spec],
                out_specs=o_spec,
                scratch_shapes=[pltpu.VMEM((tm_eff, tn), jnp.float32)],
            ),
            compiler_params=pltpu.CompilerParams(
                dimension_semantics=("parallel", "parallel", "arbitrary"),
                vmem_limit_bytes=32 * 1024 * 1024,
            ),
            interpret=interpret,
        )(x2, weight, b2)

    return out.reshape(orig_shape[:-1] + (n_out,))


def init_params(dim, initialization_type, key):
    """Deterministic parameter init mirroring the PyTorch module's __init__."""
    if initialization_type == "zeros":
        w = jnp.zeros((dim, dim), jnp.float32)
        b = jnp.zeros((dim,), jnp.float32)
    elif initialization_type == "eye":
        w = jnp.eye(dim, dtype=jnp.float32)
        b = jnp.zeros((dim,), jnp.float32)
    elif initialization_type == "xavier":
        bound = (6.0 / (dim + dim)) ** 0.5
        w = jax.random.uniform(key, (dim, dim), jnp.float32, -bound, bound)
        b = jnp.zeros((dim,), jnp.float32)
    elif initialization_type == "default":
        # PyTorch default: kaiming-uniform-ish; deterministic uniform stand-in.
        bound = 1.0 / (dim ** 0.5)
        kw, kb = jax.random.split(key)
        w = jax.random.uniform(kw, (dim, dim), jnp.float32, -bound, bound)
        b = jax.random.uniform(kb, (dim,), jnp.float32, -bound, bound)
    else:
        raise Exception("Invalid initialization type")
    return w, b


if __name__ == "__main__":
    key = jax.random.PRNGKey(0)
    k_x, k_w = jax.random.split(key)

    batch, seq, dim = 2, 8, 32
    x = jax.random.normal(k_x, (batch, seq, dim), jnp.float32)
    w, b = init_params(dim, "xavier", k_w)

    y = jax.block_until_ready(linear_projector(x, w, b))

    # Reference check against plain JAX (PyTorch nn.Linear semantics).
    y_ref = x @ w.T + b
    assert y.shape == x.shape
    assert jnp.allclose(y, y_ref, atol=1e-5, rtol=1e-5), float(jnp.max(jnp.abs(y - y_ref)))

    print("KERNEL_OK")
</pallas_src>

<mosaic_0001>
module attributes {stable_mosaic.version = 11 : i64} {
  func.func @_linear_kernel_fused(%arg0: i32, %arg1: i32, %arg2: memref<16x32xf32, #tpu.memory_space<vmem>>, %arg3: memref<32x32xf32, #tpu.memory_space<vmem>>, %arg4: memref<1x32xf32, #tpu.memory_space<vmem>>, %arg5: memref<16x32xf32, #tpu.memory_space<vmem>>) attributes {dimension_semantics = [#tpu.dimension_semantics<parallel>, #tpu.dimension_semantics<parallel>], iteration_bounds = array<i64: 1, 1>, scalar_prefetch = 0 : i64, scratch_operands = 0 : i64, tpu.core_type = #tpu.core_type<tc>, window_params = [{transform_indices = @transform_0, window_bounds = array<i64: 16, 32>}, {pipeline_mode = #tpu.pipeline_mode<synchronous>, transform_indices = @transform_1, window_bounds = array<i64: 32, 32>}, {pipeline_mode = #tpu.pipeline_mode<synchronous>, transform_indices = @transform_2, window_bounds = array<i64: 1, 32>}, {transform_indices = @transform_3, window_bounds = array<i64: 16, 32>}]} {
    %c0 = arith.constant 0 : index
    %c0_0 = arith.constant 0 : index
    %0 = vector.load %arg2[%c0, %c0_0] : memref<16x32xf32, #tpu.memory_space<vmem>>, vector<16x32xf32>
    %c0_1 = arith.constant 0 : index
    %c0_2 = arith.constant 0 : index
    %1 = vector.load %arg3[%c0_1, %c0_2] : memref<32x32xf32, #tpu.memory_space<vmem>>, vector<32x32xf32>
    %cst = arith.constant dense<0.000000e+00> : vector<16x32xf32>
    %2 = tpu.matmul %0, %1, %cst {dimension_numbers = #tpu.dot_dimension_numbers<[1], [1], [0], [0], [0, 0, 1, 0], [], []>} : vector<16x32xf32>, vector<32x32xf32>, vector<16x32xf32> -> vector<16x32xf32>
    %c0_3 = arith.constant 0 : index
    %c0_4 = arith.constant 0 : index
    %3 = vector.load %arg4[%c0_3, %c0_4] : memref<1x32xf32, #tpu.memory_space<vmem>>, vector<1x32xf32>
    %4 = vector.broadcast %3 : vector<1x32xf32> to vector<16x32xf32>
    %5 = arith.addf %2, %4 : vector<16x32xf32>
    %c0_5 = arith.constant 0 : index
    %c0_6 = arith.constant 0 : index
    %6 = vector.load %arg5[%c0_5, %c0_6] : memref<16x32xf32, #tpu.memory_space<vmem>>, vector<16x32xf32>
    tpu.vector_store %arg5[%c0_5, %c0_6], %5 {strides = array<i32>} : memref<16x32xf32, #tpu.memory_space<vmem>>, vector<16x32xf32>,
    return
  }
  func.func @transform_0(%arg0: i32, %arg1: i32) -> (i32, i32) {
    %c0_i32 = arith.constant 0 : i32
    %c0_i32_0 = arith.constant 0 : i32
    return %arg0, %c0_i32 : i32, i32
  }
  func.func @transform_1(%arg0: i32, %arg1: i32) -> (i32, i32) {
    %c0_i32 = arith.constant 0 : i32
    %c0_i32_0 = arith.constant 0 : i32
    return %arg1, %c0_i32 : i32, i32
  }
  func.func @transform_2(%arg0: i32, %arg1: i32) -> (i32, i32) {
    %c0_i32 = arith.constant 0 : i32
    %c0_i32_0 = arith.constant 0 : i32
    return %c0_i32, %arg1 : i32, i32
  }
  func.func @transform_3(%arg0: i32, %arg1: i32) -> (i32, i32) {
    %c0_i32 = arith.constant 0 : i32
    return %arg0, %arg1 : i32, i32
  }
}

</mosaic_0001>

<llo_original>
// kernel: tpu_custom_call.1
$region0: #{tpu_custom_call.1}
  #allocation0 [shape = 'u32[]', space=smem, size = 0x4, offset = 0x4, fixed_abs, tag = 'smem constant byte address 0x4 - core index']
  #allocation1 [shape = 'u32[144,128]{1,0:T(1,128)}', space=vmem, size = 0x12000, scoped, tag = 'internal scratch']
  %s0 = inlined_call_operand.hbm [shape: f32[16,32], index: 0, kind: input, shape index: {}]
  %s1 = inlined_call_operand.hbm [shape: f32[32,32], index: 1, kind: input, shape index: {}]
  %s2 = inlined_call_operand.vmem [shape: f32[1,32], index: 2, kind: input, shape index: {}]
  %s3 = inlined_call_operand.hbm [shape: f32[16,32], index: 3, kind: output, shape index: {}]
  %s4 = sld [smem:[#allocation0]]
  $region30: #{tpu_custom_call.1} parent=0
    _
  %s6 = ssub.s32 1, %s4
  %s7 = scalar_select 0, %s6, %s4
  $region1: #{tpu_custom_call.1} parent=0
    #allocation2 [shape = 'u8[8192]{0}', space=vmem, size = 0x2000, scoped, tag = 'input window, operand 0, single buffered']
    #allocation3 [shape = 's32[1]{0}', space=sflag, size = 0x4, scoped, tag = 'scoped memory for tpu_custom_call.1']
    #allocation4 [shape = 's32[1]{0}', space=sflag, size = 0x4, scoped, tag = 'scoped memory for tpu_custom_call.1']
    #allocation5 [shape = 'u8[16384]{0}', space=vmem, size = 0x4000, scoped, tag = 'input window, operand 1, single buffered']
    #allocation6 [shape = 's32[1]{0}', space=sflag, size = 0x4, scoped, tag = 'scoped memory for tpu_custom_call.1']
    #allocation7 [shape = 'u8[8192]{0}', space=vmem, size = 0x2000, scoped, tag = 'output window, operand 0, single buffered']
    %8 = vsyncpa [#allocation3], 0
    %9 = vsyncpa [#allocation6], 0
    %10 = vsyncpa [#allocation4], 0
    // Predicated region
    $region2: #{tpu_custom_call.1} parent=1 // pred_check
      _
    $region3: #{tpu_custom_call.1} parent=1 // pred_check_branch
      %12 = sbr.rel (0) target = $region5
    $region4: #{tpu_custom_call.1} parent=1 // pred_region
      %s14 = ssub.s32 256, 256
      %15 = vsyncadd [#allocation3], %s14
      %s16 = sshll.u32 [#allocation2], 4
      %s17 = int_to_ptr.vmem [resolvable:$true] %s16
      %22 = dma.hbm_to_vmem [thread:$0]  %s0, 256, %s17, [#allocation3], 128, 128, 8
    $region5: #{tpu_custom_call.1} parent=1 // pred_fallthru
      _
    // Predicated region
    $region6: #{tpu_custom_call.1} parent=1 // pred_check
      _
    $region7: #{tpu_custom_call.1} parent=1 // pred_check_branch
      %24 = sbr.rel (0) target = $region9
    $region8: #{tpu_custom_call.1} parent=1 // pred_region
      %s26 = ssub.s32 512, 512
      %27 = vsyncadd [#allocation6], %s26
      %s28 = sshll.u32 [#allocation5], 4
      %s29 = int_to_ptr.vmem [resolvable:$true] %s28
      %34 = dma.hbm_to_vmem [thread:$0]  %s1, 512, %s29, [#allocation6], 128, 128, 8
    $region9: #{tpu_custom_call.1} parent=1 // pred_fallthru
      _
    // Predicated region
    $region10: #{tpu_custom_call.1} parent=1 // pred_check
      _
    $region11: #{tpu_custom_call.1} parent=1 // pred_check_branch
      %36 = sbr.rel (0) target = $region13
    $region12: #{tpu_custom_call.1} parent=1 // pred_region
      _
    $region13: #{tpu_custom_call.1} parent=1 // pred_fallthru
      _
    // Predicated region
    $region14: #{tpu_custom_call.1} parent=1 // pred_check
      _
    $region15: #{tpu_custom_call.1} parent=1 // pred_check_branch
      %38 = sbr.rel (0) target = $region17
    $region16: #{tpu_custom_call.1} parent=1 // pred_region
      %39 = dma.done [#allocation3], 256
    $region17: #{tpu_custom_call.1} parent=1 // pred_fallthru
      _
    // Predicated region
    $region18: #{tpu_custom_call.1} parent=1 // pred_check
      _
    $region19: #{tpu_custom_call.1} parent=1 // pred_check_branch
      %41 = sbr.rel (0) target = $region21
    $region20: #{tpu_custom_call.1} parent=1 // pred_region
      %42 = dma.done [#allocation6], 512
    $region21: #{tpu_custom_call.1} parent=1 // pred_fallthru
      _
    %v43 = vld [vmem:[#allocation2] sm:$0xff]
    %v44 = vld [vmem:[#allocation2 + $0x8] sm:$0xff]
    %v45 = vld [vmem:[#allocation5] sm:$0xff]
    %v46 = vld [vmem:[#allocation5 + $0x8] sm:$0xff]
    %v47 = vld [vmem:[#allocation5 + $0x10] sm:$0xff]
    %v48 = vld [vmem:[#allocation5 + $0x18] sm:$0xff]
    %v49 = vld [vmem:[%s2] sm:$0x1]
    %v51 = vlaneseq
    %v52 = vshrl.u32 %v51, 7
    %v53 = vsub.s32 0, %v52
    %v54 = vrot.slane %v49, %v53
    %vm56 = vcmask 261120
    %v58 = vsel %vm56, %v43, 0
    %v61 = vsel %vm56, %v44, 0
    %v64 = vsel %vm56, %v45, 0
    %v67 = vsel %vm56, %v46, 0
    %v70 = vsel %vm56, %v47, 0
    %v73 = vsel %vm56, %v48, 0
    %75 = vmatprep.subr.mxu0 0.0
    %76 = vmatpush1.xpose.msra.mxu0 %v64
    %77 = vmatprep.subr.mxu0 0.0
    %78 = vmatpush1.xpose.msra.mxu0 %v67
    %79 = vmatprep.subr.mxu0 0.0
    %80 = vmatpush1.xpose.msra.mxu0 %v70
    %81 = vmatprep.subr.mxu0 0.0
    %82 = vmatpush1.xpose.msra.mxu0 %v73
    %83 = vmatprep.subr.mxu0 0.0
    %84 = vmatpush1.xpose.msra.mxu0 0.0
    %85 = vmatprep.subr.mxu0 0.0
    %86 = vmatpush1.xpose.msra.mxu0 0.0
    %87 = vmatprep.subr.mxu0 0.0
    %88 = vmatpush1.xpose.msra.mxu0 0.0
    %89 = vmatprep.subr.mxu0 0.0
    %90 = vmatpush1.xpose.msra.mxu0 0.0
    %91 = vmatprep.subr.mxu0 0.0
    %92 = vmatpush1.xpose.msra.mxu0 0.0
    %93 = vmatprep.subr.mxu0 0.0
    %94 = vmatpush1.xpose.msra.mxu0 0.0
    %95 = vmatprep.subr.mxu0 0.0
    %96 = vmatpush1.xpose.msra.mxu0 0.0
    %97 = vmatprep.subr.mxu0 0.0
    %98 = vmatpush1.xpose.msra.mxu0 0.0
    %99 = vmatprep.subr.mxu0 0.0
    %100 = vmatpush1.xpose.msra.mxu0 0.0
    %101 = vmatprep.subr.mxu0 0.0
    %102 = vmatpush1.xpose.msra.mxu0 0.0
    %103 = vmatprep.subr.mxu0 0.0
    %104 = vmatpush1.xpose.msra.mxu0 0.0
    %105 = vmatprep.subr.mxu0 0.0
    %106 = vmatpush1.xpose.msra.mxu0 0.0
    %107 = vmatprep.subr.mxu0 0.0
    %108 = vmatpush1.xpose.msra.mxu0 0.0
    %109 = vmatprep.subr.mxu0 0.0
    %110 = vmatpush1.xpose.msra.mxu0 0.0
    %111 = vmatprep.subr.mxu0 0.0
    %112 = vmatpush1.xpose.msra.mxu0 0.0
    %113 = vmatprep.subr.mxu0 0.0
    %114 = vmatpush1.xpose.msra.mxu0 0.0
    %115 = vmatprep.subr.mxu0 0.0
    %116 = vmatpush1.xpose.msra.mxu0 0.0
    %117 = vmatprep.subr.mxu0 0.0
    %118 = vmatpush1.xpose.msra.mxu0 0.0
    %119 = vmatprep.subr.mxu0 0.0
    %120 = vmatpush1.xpose.msra.mxu0 0.0
    %121 = vmatprep.subr.mxu0 0.0
    %122 = vmatpush1.xpose.msra.mxu0 0.0
    %123 = vmatprep.subr.mxu0 0.0
    %124 = vmatpush1.xpose.msra.mxu0 0.0
    %125 = vmatprep.subr.mxu0 0.0
    %126 = vmatpush1.xpose.msra.mxu0 0.0
    %127 = vmatprep.subr.mxu0 0.0
    %128 = vmatpush1.xpose.msra.mxu0 0.0
    %129 = vmatprep.subr.mxu0 0.0
    %130 = vmatpush1.xpose.msra.mxu0 0.0
    %131 = vmatprep.subr.mxu0 0.0
    %132 = vmatpush1.xpose.msra.mxu0 0.0
    %133 = vmatprep.subr.mxu0 0.0
    %134 = vmatpush1.xpose.msra.mxu0 0.0
    %135 = vmatprep.subr.mxu0 0.0
    %136 = vmatpush1.xpose.msra.mxu0 0.0
    %137 = vmatprep.subr.mxu0 0.0
    %138 = vmatpush1.xpose.msra.mxu0 0.0
    %139 = vmatprep.mubr.f32.mxu0 0.0
    %140 = vmatmul.mubr.f32.gmra.mrb[0].mxu0 %v58
    %v141 = vpop.f32.mrb[0].mxu0
    %v142 = vadd.f32 %v54, %v141
    %v143 = vpop.f32.mrb[0].mxu0
    %144 = vmatprep.mubr.f32.mxu0 0.0
    %145 = vmatmul.mubr.f32.gmra.mrb[0].mxu0 %v61
    %v146 = vpop.f32.mrb[0].mxu0
    %v147 = vadd.f32 %v54, %v146
    %v148 = vpop.f32.mrb[0].mxu0
    %149 = vdwg.mxu0
    %150 = vst.msk [vmem:[#allocation7] sm:$0xff] %vm56, %v142
    %151 = vst.msk [vmem:[#allocation7 + $0x8] sm:$0xff] %vm56, %v147
    // Predicated region
    $region22: #{tpu_custom_call.1} parent=1 // pred_check
      _
    $region23: #{tpu_custom_call.1} parent=1 // pred_check_branch
      %153 = sbr.rel (0) target = $region25
    $region24: #{tpu_custom_call.1} parent=1 // pred_region
      %s155 = ssub.s32 256, 256
      %156 = vsyncadd [#allocation4], %s155
      %s157 = sshll.u32 [#allocation7], 4
      %s158 = int_to_ptr.vmem [resolvable:$true] %s157
      %163 = dma.vmem_to_hbm [thread:$0]  %s158, 256, %s3, [#allocation4], 128, 128, 8
    $region25: #{tpu_custom_call.1} parent=1 // pred_fallthru
      _
    // Predicated region
    $region26: #{tpu_custom_call.1} parent=1 // pred_check
      _
    $region27: #{tpu_custom_call.1} parent=1 // pred_check_branch
      %165 = sbr.rel (0) target = $region29
    $region28: #{tpu_custom_call.1} parent=1 // pred_region
      %166 = dma.done [#allocation4], 256
    $region29: #{tpu_custom_call.1} parent=1 // pred_fallthru
      _
    %167 = vsyncpa [#allocation3], 1
    %168 = vsyncpa [#allocation6], 1
    %169 = vsyncpa [#allocation4], 1

</llo_original>
